<compile_context>
chip_gen: v6e
topology: v6e:2x2x1
jax: 0.10.0
libtpu: 0.0.40
codegen_flags: <defaults>
</compile_context>

<pallas_src>
import functools

import jax
import jax.numpy as jnp
from jax.experimental import pallas as pl
from jax.experimental.pallas import tpu as pltpu


# ----------------------------------------------------------------------------
# Kernel 1: first 1x1 conv (Cin -> F), tiled over (batch, time).
# ----------------------------------------------------------------------------
def _first_conv_kernel(x_ref, w_ref, b_ref, o_ref):
    # x_ref: (1, Cin, TT) ; w_ref: (F, Cin) bf16 ; b_ref: (F, 1) f32
    # o_ref: (1, F, TT) bf16
    x = x_ref[0].astype(jnp.bfloat16)                      # bf16 MXU operands
    y = jnp.dot(w_ref[...], x, preferred_element_type=jnp.float32)
    o_ref[0] = (y + b_ref[...]).astype(o_ref.dtype)


# ----------------------------------------------------------------------------
# Kernel 2: fused TCN body -- all residual blocks + final classifier.
# ----------------------------------------------------------------------------
def _tcn_body_kernel(h_ref, wd_ref, bd_ref, wp_ref, bp_ref, wl_ref, bl_ref,
                     o_ref, pad_ref, *, num_layers, seq_len, pad):
    # h_ref : (1, F, T) bf16      first-conv activation
    # wd_ref: (L, 3, F, F) bf16   dilated-conv weights (out, in) per tap
    # bd_ref: (L, F, 1)  f32      dilated-conv bias
    # wp_ref: (L, F, F)  bf16     1x1 conv weights
    # bp_ref: (L, F, 1)  f32      1x1 conv bias
    # wl_ref: (C, F)     bf16     classifier weight
    # bl_ref: (C, 1)     f32      classifier bias
    # o_ref : (1, C, T)  f32
    # pad_ref: (F, T + 2*pad) bf16 VMEM scratch (zero halos + current act)
    T = seq_len
    F = h_ref.shape[1]

    # Zero only the halo strips (re-done every grid step: scratch is per-core
    # and uninitialized; the middle region is fully overwritten each layer).
    zeros = jnp.zeros((F, pad), dtype=pad_ref.dtype)
    pad_ref[:, 0:pad] = zeros
    pad_ref[:, pad + T:pad + T + pad] = zeros

    # Residual carrier stays in f32 for the whole stage.
    act = h_ref[0].astype(jnp.float32)                     # (F, T)

    for layer in range(num_layers):
        d = layer + 1                                      # dilation schedule
        # Stage the current activation (bf16) into the padded scratch; the
        # K=3 taps are then plain static slices -- no roll / iota / select.
        pad_ref[:, pad:pad + T] = act.astype(jnp.bfloat16)

        # y[:, t] = sum_k W_k @ x[:, t + k*d - d]   (Conv1d, padding=dilation)
        acc = jnp.dot(wd_ref[layer, 0], pad_ref[:, pad - d:pad - d + T],
                      preferred_element_type=jnp.float32)
        acc = acc + jnp.dot(wd_ref[layer, 1], pad_ref[:, pad:pad + T],
                            preferred_element_type=jnp.float32)
        acc = acc + jnp.dot(wd_ref[layer, 2], pad_ref[:, pad + d:pad + d + T],
                            preferred_element_type=jnp.float32)

        h = jnp.maximum(acc + bd_ref[layer], 0.0).astype(jnp.bfloat16)  # ReLU
        act = (jnp.dot(wp_ref[layer], h, preferred_element_type=jnp.float32)
               + bp_ref[layer] + act)                      # 1x1 conv + residual

    # Final classifier: (C, F) @ (F, T) -> lane-dense (C, T) store.
    logits = (jnp.dot(wl_ref[...], act.astype(jnp.bfloat16),
                      preferred_element_type=jnp.float32) + bl_ref[...])
    o_ref[0] = logits.astype(o_ref.dtype)


# ----------------------------------------------------------------------------
# Wrappers
# ----------------------------------------------------------------------------
def _pick_time_tile(T, target):
    """Largest divisor of T that is <= target (full T for short sequences)."""
    if T <= target:
        return T
    for tt in range(target, 0, -1):
        if T % tt == 0:
            return tt
    return T


def single_stage_tcn_forward(x_nct, params, *, time_tile=512):
    """x_nct: PyTorch layout (N, C_in, T). Returns (N, num_classes, T) f32."""
    B, Cin, T = x_nct.shape
    F = params["first_w"].shape[0]
    C = params["last_w"].shape[0]
    L, K = params["wd"].shape[:2]
    assert K == 3, "residual add requires kernel_size == 3 (padding == dilation)"

    # ---- Kernel 1: first 1x1 conv, (B, T-tile) parallel grid -------------
    tt = _pick_time_tile(T, time_tile)
    wf = params["first_w"].astype(jnp.bfloat16)
    h = pl.pallas_call(
        _first_conv_kernel,
        out_shape=jax.ShapeDtypeStruct((B, F, T), jnp.bfloat16),
        grid=(B, T // tt),
        in_specs=[
            pl.BlockSpec((1, Cin, tt), lambda b, t: (b, 0, t)),
            pl.BlockSpec((F, Cin), lambda b, t: (0, 0)),
            pl.BlockSpec((F, 1), lambda b, t: (0, 0)),
        ],
        out_specs=pl.BlockSpec((1, F, tt), lambda b, t: (b, 0, t)),
        compiler_params=pltpu.CompilerParams(
            dimension_semantics=("parallel", "parallel")),
    )(x_nct, wf, params["first_b"])

    # ---- Kernel 2: fused residual blocks + classifier --------------------
    # Lane-aligned halo (>= max dilation) so the staging store is vreg-aligned.
    pad = ((max(L, 1) + 127) // 128) * 128
    wd = params["wd"].astype(jnp.bfloat16)
    wp = params["wp"].astype(jnp.bfloat16)
    wl = params["last_w"].astype(jnp.bfloat16)
    kern = functools.partial(_tcn_body_kernel, num_layers=L, seq_len=T, pad=pad)

    out = pl.pallas_call(
        kern,
        out_shape=jax.ShapeDtypeStruct((B, C, T), jnp.float32),
        grid=(B,),
        in_specs=[
            pl.BlockSpec((1, F, T), lambda b: (b, 0, 0)),
            pl.BlockSpec((L, 3, F, F), lambda b: (0, 0, 0, 0)),
            pl.BlockSpec((L, F, 1), lambda b: (0, 0, 0)),
            pl.BlockSpec((L, F, F), lambda b: (0, 0, 0)),
            pl.BlockSpec((L, F, 1), lambda b: (0, 0, 0)),
            pl.BlockSpec((C, F), lambda b: (0, 0)),
            pl.BlockSpec((C, 1), lambda b: (0, 0)),
        ],
        out_specs=pl.BlockSpec((1, C, T), lambda b: (b, 0, 0)),
        scratch_shapes=[pltpu.VMEM((F, T + 2 * pad), jnp.bfloat16)],
        compiler_params=pltpu.CompilerParams(
            dimension_semantics=("parallel",)),
    )(h, wd, params["bd"], wp, params["bp"], wl, params["last_b"])
    return out


# ----------------------------------------------------------------------------
# Deterministic parameter construction (synthetic, not a checkpoint load)
# ----------------------------------------------------------------------------
def make_params(key, num_layers, num_filters, kernel_size, num_classes,
                in_channels):
    assert kernel_size == 3
    keys = jax.random.split(key, 8)

    def nrm(k, shape, scale=0.05):
        return jax.random.normal(k, shape, jnp.float32) * scale

    L, F = num_layers, num_filters
    return {
        "first_w": nrm(keys[0], (F, in_channels)),
        "first_b": nrm(keys[1], (F, 1)),
        "wd": nrm(keys[2], (L, kernel_size, F, F)),   # (out, in) per tap
        "bd": nrm(keys[3], (L, F, 1)),
        "wp": nrm(keys[4], (L, F, F)),
        "bp": nrm(keys[5], (L, F, 1)),
        "last_w": nrm(keys[6], (num_classes, F)),
        "last_b": nrm(keys[7], (num_classes, 1)),
    }


# ----------------------------------------------------------------------------
# Pure-JAX reference (mirrors the kernel's bf16-operand / f32-accumulate math)
# ----------------------------------------------------------------------------
def ref_forward(x_nct, params):
    f32, bf16 = jnp.float32, jnp.bfloat16
    L = params["wd"].shape[0]
    xb = x_nct.astype(bf16)
    h = jnp.einsum("fc,bct->bft", params["first_w"].astype(bf16), xb,
                   preferred_element_type=f32) + params["first_b"][None]
    h = h.astype(bf16).astype(f32)               # bf16 HBM handoff in kernel path
    T = h.shape[-1]
    for layer in range(L):
        d = layer + 1
        res = h
        hp = jnp.pad(h.astype(bf16), ((0, 0), (0, 0), (d, d)))
        acc = sum(
            jnp.einsum("oi,bit->bot", params["wd"][layer, k].astype(bf16),
                       hp[:, :, k * d:k * d + T], preferred_element_type=f32)
            for k in range(3))
        acc = acc + params["bd"][layer][None]
        hh = jnp.maximum(acc, 0.0).astype(bf16)
        h = (jnp.einsum("oi,bit->bot", params["wp"][layer].astype(bf16), hh,
                        preferred_element_type=f32)
             + params["bp"][layer][None] + res)
    out = (jnp.einsum("of,bft->bot", params["last_w"].astype(bf16),
                      h.astype(bf16), preferred_element_type=f32)
           + params["last_b"][None])
    return out


# ----------------------------------------------------------------------------
if __name__ == "__main__":
    # Small, module-consistent shapes (PyTorch layout: (N, C_in, T)).
    B, IN_CH, T = 2, 64, 128
    NUM_LAYERS, NUM_FILTERS, KSIZE, NUM_CLASSES = 3, 32, 3, 8

    key = jax.random.PRNGKey(0)
    k_x, k_p = jax.random.split(key)
    x = jax.random.normal(k_x, (B, IN_CH, T), jnp.float32)
    params = make_params(k_p, NUM_LAYERS, NUM_FILTERS, KSIZE, NUM_CLASSES, IN_CH)

    out = jax.block_until_ready(single_stage_tcn_forward(x, params))
    ref = jax.block_until_ready(ref_forward(x, params))

    assert out.shape == (B, NUM_CLASSES, T), out.shape
    max_err = float(jnp.max(jnp.abs(out - ref)))
    assert jnp.allclose(out, ref, atol=2e-3, rtol=2e-3), f"mismatch {max_err}"

    print("KERNEL_OK")
</pallas_src>

<mosaic_0001>
module attributes {stable_mosaic.version = 11 : i64} {
  func.func @_first_conv_kernel(%arg0: i32, %arg1: i32, %arg2: memref<1x64x128xf32, #tpu.memory_space<vmem>>, %arg3: memref<32x64xbf16, #tpu.memory_space<vmem>>, %arg4: memref<32x1xf32, #tpu.memory_space<vmem>>, %arg5: memref<1x32x128xbf16, #tpu.memory_space<vmem>>) attributes {dimension_semantics = [#tpu.dimension_semantics<parallel>, #tpu.dimension_semantics<parallel>], iteration_bounds = array<i64: 2, 1>, scalar_prefetch = 0 : i64, scratch_operands = 0 : i64, tpu.core_type = #tpu.core_type<tc>, window_params = [{transform_indices = @transform_0, window_bounds = array<i64: 1, 64, 128>}, {pipeline_mode = #tpu.pipeline_mode<synchronous>, transform_indices = @transform_1, window_bounds = array<i64: 32, 64>}, {pipeline_mode = #tpu.pipeline_mode<synchronous>, transform_indices = @transform_2, window_bounds = array<i64: 32, 1>}, {transform_indices = @transform_3, window_bounds = array<i64: 1, 32, 128>}]} {
    %c0 = arith.constant 0 : index
    %c0_0 = arith.constant 0 : index
    %c0_1 = arith.constant 0 : index
    %0 = vector.load %arg2[%c0, %c0_0, %c0_1] : memref<1x64x128xf32, #tpu.memory_space<vmem>>, vector<1x64x128xf32>
    %1 = vector.shape_cast %0 : vector<1x64x128xf32> to vector<64x128xf32>
    %2 = arith.truncf %1 : vector<64x128xf32> to vector<64x128xbf16>
    %c0_2 = arith.constant 0 : index
    %c0_3 = arith.constant 0 : index
    %3 = vector.load %arg3[%c0_2, %c0_3] : memref<32x64xbf16, #tpu.memory_space<vmem>>, vector<32x64xbf16>
    %cst = arith.constant dense<0.000000e+00> : vector<32x128xf32>
    %4 = tpu.matmul %3, %2, %cst {dimension_numbers = #tpu.dot_dimension_numbers<[1], [0], [0], [1], [0, 0, 1, 1], [], []>} : vector<32x64xbf16>, vector<64x128xbf16>, vector<32x128xf32> -> vector<32x128xf32>
    %c0_4 = arith.constant 0 : index
    %c0_5 = arith.constant 0 : index
    %5 = vector.load %arg4[%c0_4, %c0_5] : memref<32x1xf32, #tpu.memory_space<vmem>>, vector<32x1xf32>
    %6 = vector.broadcast %5 : vector<32x1xf32> to vector<32x128xf32>
    %7 = arith.addf %4, %6 : vector<32x128xf32>
    %8 = arith.truncf %7 : vector<32x128xf32> to vector<32x128xbf16>
    %c0_6 = arith.constant 0 : index
    %c0_7 = arith.constant 0 : index
    %c0_8 = arith.constant 0 : index
    %9 = vector.load %arg5[%c0_6, %c0_7, %c0_8] : memref<1x32x128xbf16, #tpu.memory_space<vmem>>, vector<1x32x128xbf16>
    %10 = vector.shape_cast %9 : vector<1x32x128xbf16> to vector<32x128xbf16>
    %11 = vector.shape_cast %8 : vector<32x128xbf16> to vector<1x32x128xbf16>
    tpu.vector_store %arg5[%c0_6, %c0_7, %c0_8], %11 {strides = array<i32>} : memref<1x32x128xbf16, #tpu.memory_space<vmem>>, vector<1x32x128xbf16>,
    return
  }
  func.func @transform_0(%arg0: i32, %arg1: i32) -> (i32, i32, i32) {
    %c0_i32 = arith.constant 0 : i32
    %c0_i32_0 = arith.constant 0 : i32
    return %arg0, %c0_i32, %arg1 : i32, i32, i32
  }
  func.func @transform_1(%arg0: i32, %arg1: i32) -> (i32, i32) {
    %c0_i32 = arith.constant 0 : i32
    %c0_i32_0 = arith.constant 0 : i32
    %c0_i32_1 = arith.constant 0 : i32
    return %c0_i32, %c0_i32_0 : i32, i32
  }
  func.func @transform_2(%arg0: i32, %arg1: i32) -> (i32, i32) {
    %c0_i32 = arith.constant 0 : i32
    %c0_i32_0 = arith.constant 0 : i32
    %c0_i32_1 = arith.constant 0 : i32
    return %c0_i32, %c0_i32_0 : i32, i32
  }
  func.func @transform_3(%arg0: i32, %arg1: i32) -> (i32, i32, i32) {
    %c0_i32 = arith.constant 0 : i32
    %c0_i32_0 = arith.constant 0 : i32
    return %arg0, %c0_i32, %arg1 : i32, i32, i32
  }
}

</mosaic_0001>

<llo_original>
// kernel: tpu_custom_call.1
$region0: #{tpu_custom_call.1}
  #allocation0 [shape = 'u32[]', space=smem, size = 0x4, offset = 0x4, fixed_abs, tag = 'smem constant byte address 0x4 - core index']
  #allocation1 [shape = 'u32[144,128]{1,0:T(1,128)}', space=vmem, size = 0x12000, scoped, tag = 'internal scratch']
  %s0 = inlined_call_operand.hbm [shape: f32[2,64,128], index: 0, kind: input, shape index: {}]
  %s1 = inlined_call_operand.vmem [shape: bf16[32,64], index: 1, kind: input, shape index: {}]
  %s2 = inlined_call_operand.vmem [shape: f32[32,1], index: 2, kind: input, shape index: {}]
  %s3 = inlined_call_operand.hbm [shape: bf16[2,32,128], index: 3, kind: output, shape index: {}]
  %s4 = sld [smem:[#allocation0]]
  $region49: #{tpu_custom_call.1} parent=0
    _
  %s6 = ssub.s32 1, %s4
  %s7 = scalar_select 0, %s6, %s4
  $region1: #{tpu_custom_call.1} parent=0
    #allocation2 [shape = 'u8[65536]{0}', space=vmem, size = 0x10000, scoped, tag = 'input window, operand 0']
    #allocation3 [shape = 's32[2]{0}', space=sflag, size = 0x8, scoped, tag = 'scoped memory for tpu_custom_call.1']
    #allocation4 [shape = 's32[2]{0}', space=sflag, size = 0x8, scoped, tag = 'scoped memory for tpu_custom_call.1']
    #allocation5 [shape = 'u8[16384]{0}', space=vmem, size = 0x4000, scoped, tag = 'output window, operand 0']
    %8 = vsyncpa [#allocation3], 0
    %s9 = scalar_lea.sflag [#allocation3], 1
    %10 = vsyncpa %s9, 0
    %11 = vsyncpa [#allocation4], 0
    %s12 = scalar_lea.sflag [#allocation4], 1
    %13 = vsyncpa %s12, 0
    loop: start=0, step=1, limit=4
    $region2: #{tpu_custom_call.1} parent=1 // loop_pre_header
      _
    $region3: #{tpu_custom_call.1} parent=1 // loop_header
      %s15 = sphi 0, %s19
      %p16 = scmp.ge.s32.totalorder %s15, 4
      %s22 = sphi 0, %s34
      %s23 = sphi 0, %s30
      %s24 = sphi 0, %s22
      %s25 = sphi 0, %s23
      %s26 = sphi 0, %s24
      %s27 = sphi 0, %s25
      %s39 = sphi 0, %s41
      %s42 = sphi 0, %s39
      %s43 = sphi 0, %s42
      %s59 = sphi 0, %s43
      %s63 = sphi 0, %s63
      %s65 = sphi 0, %s63
      %s66 = sphi 0, %s65
      %s80 = sphi 0, %s66
      %s84 = sphi 0, %s84
      %s86 = sphi 0, %s84
      %s87 = sphi 0, %s86
      %s101 = sphi 0, %s87
      %s109 = sphi 0, %s111
      %s112 = sphi 0, %s109
      %s113 = sphi 0, %s112
      %s129 = sphi 0, %s113
    $region4: #{tpu_custom_call.1} parent=1 // loop_header_branch
      %18 = sbr.rel (%p16) target = $region8
    $region5: #{tpu_custom_call.1} parent=1 // loop_body
      %s20 = ssub.s32 %s15, 1
      %s21 = ssub.s32 %s15, 2
      %s28 = sadd.s32 1, %s23
      %p29 = scmp.ge.s32.totalorder %s28, 1
      %s30 = scalar_select %p29, 0, %s28
      %s31 = sadd.s32 1, %s22
      %s32 = scalar_select %p29, %s31, %s22
      %p33 = scmp.ge.s32.totalorder %s32, 2
      %s34 = scalar_select %p33, 0, %s32
      %s35 = ssub.s32 %s22, %s34
      %s36 = ssub.s32 %s23, %s30
      %s37 = sor.u32 %s35, %s36
      %p38 = scmp.eq.s32.totalorder %s37, 0
      %s40 = sadd.s32 %s39, 1
      %s41 = scalar_select %p38, %s39, %s40
      %p44 = pneg %p38
      %p45 = scmp.eq.s32.totalorder %s15, 1
      %p46 = por %p44, %p45
      %p47 = scmp.ne.s32.totalorder %s39, %s42
      %p48 = scmp.eq.s32.totalorder %s15, 0
      %p49 = por %p47, %p48
      %p50 = scmp.ne.s32.totalorder %s39, %s42
      %p51 = scmp.eq.s32.totalorder %s20, 1
      %p52 = por %p50, %p51
      %p53 = scmp.ne.s32.totalorder %s42, %s43
      %p54 = scmp.eq.s32.totalorder %s20, 0
      %p55 = por %p53, %p54
      %p56 = scmp.ne.s32.totalorder %s42, %s43
      %p57 = scmp.eq.s32.totalorder %s21, 1
      %p58 = por %p56, %p57
      %p60 = scmp.ne.s32.totalorder %s43, %s59
      %p61 = scmp.eq.s32.totalorder %s21, 0
      %p62 = por %p60, %p61
      %s64 = sadd.s32 %s63, 1
      %p67 = scmp.eq.s32.totalorder %s15, 1
      %p68 = scmp.ne.s32.totalorder %s63, %s65
      %p69 = scmp.eq.s32.totalorder %s15, 0
      %p70 = por %p68, %p69
      %p71 = scmp.ne.s32.totalorder %s63, %s65
      %p72 = scmp.eq.s32.totalorder %s20, 1
      %p73 = por %p71, %p72
      %p74 = scmp.ne.s32.totalorder %s65, %s66
      %p75 = scmp.eq.s32.totalorder %s20, 0
      %p76 = por %p74, %p75
      %p77 = scmp.ne.s32.totalorder %s65, %s66
      %p78 = scmp.eq.s32.totalorder %s21, 1
      %p79 = por %p77, %p78
      %p81 = scmp.ne.s32.totalorder %s66, %s80
      %p82 = scmp.eq.s32.totalorder %s21, 0
      %p83 = por %p81, %p82
      %s85 = sadd.s32 %s84, 1
      %p88 = scmp.eq.s32.totalorder %s15, 1
      %p89 = scmp.ne.s32.totalorder %s84, %s86
      %p90 = scmp.eq.s32.totalorder %s15, 0
      %p91 = por %p89, %p90
      %p92 = scmp.ne.s32.totalorder %s84, %s86
      %p93 = scmp.eq.s32.totalorder %s20, 1
      %p94 = por %p92, %p93
      %p95 = scmp.ne.s32.totalorder %s86, %s87
      %p96 = scmp.eq.s32.totalorder %s20, 0
      %p97 = por %p95, %p96
      %p98 = scmp.ne.s32.totalorder %s86, %s87
      %p99 = scmp.eq.s32.totalorder %s21, 1
      %p100 = por %p98, %p99
      %p102 = scmp.ne.s32.totalorder %s87, %s101
      %p103 = scmp.eq.s32.totalorder %s21, 0
      %p104 = por %p102, %p103
      %s105 = ssub.s32 %s22, %s34
      %s106 = ssub.s32 %s23, %s30
      %s107 = sor.u32 %s105, %s106
      %p108 = scmp.eq.s32.totalorder %s107, 0
      %s110 = sadd.s32 %s109, 1
      %s111 = scalar_select %p108, %s109, %s110
      %p114 = pneg %p108
      %p115 = scmp.eq.s32.totalorder %s15, 1
      %p116 = por %p114, %p115
      %p117 = scmp.ne.s32.totalorder %s109, %s112
      %p118 = scmp.eq.s32.totalorder %s15, 0
      %p119 = por %p117, %p118
      %p120 = scmp.ne.s32.totalorder %s109, %s112
      %p121 = scmp.eq.s32.totalorder %s20, 1
      %p122 = por %p120, %p121
      %p123 = scmp.ne.s32.totalorder %s112, %s113
      %p124 = scmp.eq.s32.totalorder %s20, 0
      %p125 = por %p123, %p124
      %p126 = scmp.ne.s32.totalorder %s112, %s113
      %p127 = scmp.eq.s32.totalorder %s21, 1
      %p128 = por %p126, %p127
      %p130 = scmp.ne.s32.totalorder %s113, %s129
      %p131 = scmp.eq.s32.totalorder %s21, 0
      %p132 = por %p130, %p131
      %p133 = scmp.le.s32.totalorder 1, %s15
      %p134 = scmp.lt.s32.totalorder %s15, 3
      %p135 = pnand %p133, %p134
      %p136 = pneg %p135
      // Predicated region
      $region9: #{tpu_custom_call.1} parent=5 // pred_check
        _
      $region10: #{tpu_custom_call.1} parent=5 // pred_check_branch
        %138 = sbr.rel (%p135) target = $region12
      $region11: #{tpu_custom_call.1} parent=5 // pred_region
        %s139 = ssub.s32 %s15, 1
        // Predicated region
        $region13: #{tpu_custom_call.1} parent=11 // pred_check
          %p140 = pneg %p76
        $region14: #{tpu_custom_call.1} parent=11 // pred_check_branch
          %142 = sbr.rel (%p140) target = $region16
        $region15: #{tpu_custom_call.1} parent=11 // pred_region
          _
        $region16: #{tpu_custom_call.1} parent=11 // pred_fallthru
          _
        // Predicated region
        $region17: #{tpu_custom_call.1} parent=11 // pred_check
          %p143 = pneg %p97
        $region18: #{tpu_custom_call.1} parent=11 // pred_check_branch
          %145 = sbr.rel (%p143) target = $region20
        $region19: #{tpu_custom_call.1} parent=11 // pred_region
          _
        $region20: #{tpu_custom_call.1} parent=11 // pred_fallthru
          _
      $region12: #{tpu_custom_call.1} parent=5 // pred_fallthru
        _
      %p146 = scmp.lt.s32.totalorder %s15, 2
      // Predicated region
      $region21: #{tpu_custom_call.1} parent=5 // pred_check
        %p147 = pneg %p146
      $region22: #{tpu_custom_call.1} parent=5 // pred_check_branch
        %149 = sbr.rel (%p147) target = $region24
      $region23: #{tpu_custom_call.1} parent=5 // pred_region
        // Predicated region
        $region25: #{tpu_custom_call.1} parent=23 // pred_check
          %p150 = pneg %p49
        $region26: #{tpu_custom_call.1} parent=23 // pred_check_branch
          %152 = sbr.rel (%p150) target = $region28
        $region27: #{tpu_custom_call.1} parent=23 // pred_region
          %s153 = sand.u32 %s39, 1
          %s154 = scalar_lea.sflag [#allocation3], %s153
          %s155 = sand.u32 %s39, 1
          %s156 = smul.addr %s155, 64
          %s157 = scalar_lea.vmem [#allocation2], %s156
          %s159 = ssub.s32 1024, 1024
          %160 = vsyncadd %s154, %s159
          %s161 = smul.addr %s22, 8
          %s162 = sadd.s32 %s23, %s161
          %s163 = smul.addr %s162, 128
          %s164 = scalar_lea.hbm %s0, %s163
          %s165 = sshll.u32 %s157, 4
          %s166 = int_to_ptr.vmem [resolvable:$true] %s165
          %171 = dma.hbm_to_vmem [thread:$0]  %s164, 1024, %s166, %s154, 128, 128, 8
        $region28: #{tpu_custom_call.1} parent=23 // pred_fallthru
          _
      $region24: #{tpu_custom_call.1} parent=5 // pred_fallthru
        _
      %p172 = scmp.le.s32.totalorder 1, %s15
      %p173 = scmp.lt.s32.totalorder %s15, 3
      %p174 = pnand %p172, %p173
      %p175 = pneg %p174
      // Predicated region
      $region29: #{tpu_custom_call.1} parent=5 // pred_check
        _
      $region30: #{tpu_custom_call.1} parent=5 // pred_check_branch
        %177 = sbr.rel (%p174) target = $region32
      $region31: #{tpu_custom_call.1} parent=5 // pred_region
        %s178 = ssub.s32 %s15, 1
        %s179 = sand.u32 %s42, 1
        %s180 = scalar_lea.sflag [#allocation3], %s179
        %s181 = sand.u32 %s42, 1
        %s182 = smul.addr %s181, 64
        %s183 = scalar_lea.vmem [#allocation2], %s182
        // Predicated region
        $region33: #{tpu_custom_call.1} parent=31 // pred_check
          %p184 = pneg %p55
        $region34: #{tpu_custom_call.1} parent=31 // pred_check_branch
          %186 = sbr.rel (%p184) target = $region36
        $region35: #{tpu_custom_call.1} parent=31 // pred_region
          %187 = dma.done %s180, 1024
        $region36: #{tpu_custom_call.1} parent=31 // pred_fallthru
          _
        %s188 = sand.u32 %s42, 1
        %s189 = scalar_lea.sflag [#allocation3], %s188
        %s190 = sand.u32 %s42, 1
        %s191 = smul.addr %s190, 64
        %s192 = scalar_lea.vmem [#allocation2], %s191
        %p193 = pneg %p55
        %p194 = pneg %p52
        %p195 = pneg %p76
        %p196 = pneg %p73
        %p197 = pneg %p97
        %p198 = pneg %p94
        %p199 = pneg %p125
        %p200 = pneg %p122
        %s201 = sand.u32 %s112, 1
        %s202 = scalar_lea.sflag [#allocation4], %s201
        %s203 = sand.u32 %s112, 1
        %s204 = smul.addr %s203, 16
        %s205 = scalar_lea.vmem [#allocation5], %s204
        %v207 = vld [vmem:[%s183] sm:$0xff]
        %v208 = vld [vmem:[%s183 + $0x8] sm:$0xff]
        %v209 = vld [vmem:[%s183 + $0x10] sm:$0xff]
        %v210 = vld [vmem:[%s183 + $0x18] sm:$0xff]
        %v211 = vld [vmem:[%s183 + $0x20] sm:$0xff]
        %v212 = vld [vmem:[%s183 + $0x28] sm:$0xff]
        %v213 = vld [vmem:[%s183 + $0x30] sm:$0xff]
        %v214 = vld [vmem:[%s183 + $0x38] sm:$0xff]
        %v215 = vpack.c.bf16 %v208, %v207
        %v216 = vpack.c.bf16 %v210, %v209
        %v217 = vpack.c.bf16 %v212, %v211
        %v218 = vpack.c.bf16 %v214, %v213
        %v219 = vld [vmem:[%s1] sm:$0xf]
        %v220 = vld [vmem:[%s1 + $0x4] sm:$0xf]
        %v221 = vld [vmem:[%s1 + $0x8] sm:$0xf]
        %v222 = vld [vmem:[%s1 + $0xc] sm:$0xf]
        %v223 = vld [vmem:[%s2] sm:$0xff]
        %v224 = vld [vmem:[%s2 + $0x8] sm:$0xff]
        %v225 = vld [vmem:[%s2 + $0x10] sm:$0xff]
        %v226 = vld [vmem:[%s2 + $0x18] sm:$0xff]
        %228 = vset.pattern.permute.xlu0 0
        %229 = vperm.xlu0 %228, %v223
        %v230 = vpop.permute.xlu0 %229
        %233 = vset.pattern.permute.xlu0 0
        %234 = vperm.xlu0 %233, %v224
        %v235 = vpop.permute.xlu0 %234
        %238 = vset.pattern.permute.xlu0 0
        %239 = vperm.xlu0 %238, %v225
        %v240 = vpop.permute.xlu0 %239
        %243 = vset.pattern.permute.xlu0 0
        %244 = vperm.xlu0 %243, %v226
        %v245 = vpop.permute.xlu0 %244
        %v251 = vunpack.c.l.b16 %v219
        %v252 = vunpack.c.l.b16 %v220
        %v253 = vunpack.c.l.b16 %v221
        %v254 = vunpack.c.l.b16 %v222
        %v255 = vpack.c.b16 %v252, %v251
        %v256 = vpack.c.b16 %v254, %v253
        %vm257 = vcmask 523264
        %v259 = vsel %vm257, %v255, 0
        %v262 = vsel %vm257, %v256, 0
        %264 = vmatprep.subr.bf16.mxu0 0
        %265 = vmatpush1.bf16.msra.mxu0 0
        %266 = vmatprep.subr.bf16.mxu0 0
        %267 = vmatpush1.bf16.msra.mxu0 0
        %268 = vmatprep.subr.bf16.mxu0 0
        %269 = vmatpush1.bf16.msra.mxu0 0
        %270 = vmatprep.subr.bf16.mxu0 0
        %271 = vmatpush1.bf16.msra.mxu0 0
        %272 = vmatprep.subr.bf16.mxu0 0
        %273 = vmatpush1.bf16.msra.mxu0 %v218
        %274 = vmatprep.subr.bf16.mxu0 0
        %275 = vmatpush1.bf16.msra.mxu0 %v217
        %276 = vmatprep.subr.bf16.mxu0 0
        %277 = vmatpush1.bf16.msra.mxu0 %v216
        %278 = vmatprep.subr.bf16.mxu0 0
        %279 = vmatpush1.bf16.msra.mxu0 %v215
        %280 = vmatprep.subr.bf16.mxu0 0
        %281 = vmatpush2.bf16.msra.mxu0 0
        %282 = vmatprep.subr.bf16.mxu0 0
        %283 = vmatpush2.bf16.msra.mxu0 0
        %284 = vmatprep.subr.bf16.mxu0 0
        %285 = vmatpush2.bf16.msra.mxu0 0
        %286 = vmatprep.subr.bf16.mxu0 0
        %287 = vmatpush2.bf16.msra.mxu0 0
        %288 = vmatprep.subr.bf16.mxu0 0
        %289 = vmatpush2.bf16.msra.mxu0 0
        %290 = vmatprep.subr.bf16.mxu0 0
        %291 = vmatpush2.bf16.msra.mxu0 0
        %292 = vmatprep.subr.bf16.mxu0 0
        %293 = vmatpush2.bf16.msra.mxu0 0
        %294 = vmatprep.subr.bf16.mxu0 0
        %295 = vmatpush2.bf16.msra.mxu0 0
        %296 = vmatprep.mubr.bf16.mxu0 0
        %297 = vmatmul.mubr.bf16.gmra.mxu0 %v259
        %v298 = vpop.f32.mrf.mxu0
        %v299 = vadd.f32 %v230, %v298
        %v300 = vpop.f32.mrf.mxu0
        %v301 = vpop.f32.mrf.mxu0
        %v302 = vadd.f32 %v235, %v301
        %v303 = vpop.f32.mrf.mxu0
        %304 = vmatprep.mubr.bf16.mxu0 0
        %305 = vmatmul.mubr.bf16.gmra.mxu0 %v262
        %v306 = vpop.f32.mrf.mxu0
        %v307 = vadd.f32 %v240, %v306
        %v308 = vpop.f32.mrf.mxu0
        %v309 = vpop.f32.mrf.mxu0
        %v310 = vadd.f32 %v245, %v309
        %v311 = vpop.f32.mrf.mxu0
        %312 = vdwg.mxu0
        %v313 = vpack.c.bf16 %v302, %v299
        %v314 = vpack.c.bf16 %v310, %v307
        %v317 = vunpack.c.l.b16 %v313
        %v318 = vunpack.c.h.b16 %v313
        %v319 = vunpack.c.l.b16 %v314
        %v320 = vunpack.c.h.b16 %v314
        %v321 = vpack.c.b16 %v317, %v317
        %v322 = vpack.c.b16 %v318, %v318
        %v323 = vpack.c.b16 %v319, %v319
        %v324 = vpack.c.b16 %v320, %v320
        %329 = vst [vmem:[%s205] sm:$0xf] %v321
        %330 = vst [vmem:[%s205 + $0x4] sm:$0xf] %v322
        %331 = vst [vmem:[%s205 + $0x8] sm:$0xf] %v323
        %332 = vst [vmem:[%s205 + $0xc] sm:$0xf] %v324
        %s333 = sand.u32 %s112, 1
        %s334 = scalar_lea.sflag [#allocation4], %s333
        %s335 = sand.u32 %s112, 1
        %s336 = smul.addr %s335, 16
        %s337 = scalar_lea.vmem [#allocation5], %s336
        // Predicated region
        $region37: #{tpu_custom_call.1} parent=31 // pred_check
          %p338 = pneg %p122
        $region38: #{tpu_custom_call.1} parent=31 // pred_check_branch
          %340 = sbr.rel (%p338) target = $region40
        $region39: #{tpu_custom_call.1} parent=31 // pred_region
          %s342 = ssub.s32 256, 256
          %343 = vsyncadd %s334, %s342
          %s344 = smul.addr %s24, 4
          %s345 = sadd.s32 %s25, %s344
          %s346 = smul.addr %s345, 64
          %s347 = scalar_lea.hbm %s3, %s346
          %s348 = sshll.u32 %s337, 4
          %s349 = int_to_ptr.vmem [resolvable:$true] %s348
          %354 = dma.vmem_to_hbm [thread:$0]  %s349, 256, %s347, %s334, 64, 64, 4
        $region40: #{tpu_custom_call.1} parent=31 // pred_fallthru
          _
      $region32: #{tpu_custom_call.1} parent=5 // pred_fallthru
        _
      %p355 = scmp.le.s32.totalorder 2, %s15
      // Predicated region
      $region41: #{tpu_custom_call.1} parent=5 // pred_check
        %p356 = pneg %p355
      $region42: #{tpu_custom_call.1} parent=5 // pred_check_branch
        %358 = sbr.rel (%p356) target = $region44
      $region43: #{tpu_custom_call.1} parent=5 // pred_region
        %s359 = ssub.s32 %s15, 2
        // Predicated region
        $region45: #{tpu_custom_call.1} parent=43 // pred_check
          %p360 = pneg %p128
        $region46: #{tpu_custom_call.1} parent=43 // pred_check_branch
          %362 = sbr.rel (%p360) target = $region48
        $region47: #{tpu_custom_call.1} parent=43 // pred_region
          %s363 = sand.u32 %s113, 1
          %s364 = scalar_lea.sflag [#allocation4], %s363
          %s365 = sand.u32 %s113, 1
          %s366 = smul.addr %s365, 16
          %s367 = scalar_lea.vmem [#allocation5], %s366
          %368 = dma.done %s364, 256
        $region48: #{tpu_custom_call.1} parent=43 // pred_fallthru
          _
      $region44: #{tpu_custom_call.1} parent=5 // pred_fallthru
        _
    $region6: #{tpu_custom_call.1} parent=1 // loop_footer
      %s19 = sadd.s32 1, %s15
    $region7: #{tpu_custom_call.1} parent=1 // loop_footer_branch
      %14 = sbr.rel target = $region3
    $region8: #{tpu_custom_call.1} parent=1 // loop_exit
      _
    %369 = vsyncpa [#allocation3], 1
    %s370 = scalar_lea.sflag [#allocation3], 1
    %371 = vsyncpa %s370, 1
    %372 = vsyncpa [#allocation4], 1
    %s373 = scalar_lea.sflag [#allocation4], 1
    %374 = vsyncpa %s373, 1

</llo_original>
